<compile_context>
chip_gen: v7x
topology: tpu7x:2x2x1
jax: 0.10.0
libtpu: 0.0.40
codegen_flags: <defaults>
</compile_context>

<pallas_src>
from functools import partial

import jax
import jax.numpy as jnp
from jax.experimental import pallas as pl
from jax.experimental.pallas import tpu as pltpu


def _weighted_l1_kernel(phi_ref, yin_ref, ytgt_ref, out_ref, acc_ref, *, inv_batch):
    # phi_ref : (1, D)   VMEM, resident across all grid steps
    # yin_ref : (TB, D)  VMEM, batch tile for this grid step
    # ytgt_ref: (TB, D)  VMEM, batch tile for this grid step
    # out_ref : (1,)     SMEM scalar output (written only on the last step)
    # acc_ref : (1,)     SMEM scalar accumulator (persists across grid steps)
    i = pl.program_id(0)

    @pl.when(i == 0)
    def _init():
        acc_ref[0] = jnp.float32(0.0)

    # Cast in-kernel so low-precision inputs stay narrow over the DMA; math in f32.
    err = jnp.abs(yin_ref[...].astype(jnp.float32) - ytgt_ref[...].astype(jnp.float32))
    w = err * phi_ref[...].astype(jnp.float32)              # VPU elementwise
    row_sums = jnp.sum(w, axis=-1, keepdims=True)           # lane reduce (XLU), (TB, 1)
    acc_ref[0] += jnp.sum(row_sums)                          # sublane reduce -> scalar

    @pl.when(i == pl.num_programs(0) - 1)
    def _finalize():
        out_ref[0] = acc_ref[0] * jnp.float32(inv_batch)


def learned_loss_weighted_mse(phi, y_in, y_target, *, block_b=1024):
    """Pallas TPU implementation of LearnedLossWeightedMse.forward."""
    B, D = y_in.shape
    assert phi.shape == (D,)
    assert y_target.shape == (B, D)
    phi2d = phi.reshape(1, D).astype(jnp.float32)

    # Batch tile: multiple of 8 sublanes, capped so 2 inputs x 2 pipeline buffers
    # stay far below the scoped-VMEM limit on v5e/v6e/v7x.
    tb = min(block_b, max(8, -(-B // 8) * 8))
    b_pad = -(-B // tb) * tb
    if b_pad != B:
        # Zero rows contribute |0 - 0| = 0, so padding is exact; divisor stays true B.
        pad = ((0, b_pad - B), (0, 0))
        y_in = jnp.pad(y_in, pad)
        y_target = jnp.pad(y_target, pad)

    out = pl.pallas_call(
        partial(_weighted_l1_kernel, inv_batch=1.0 / B),
        out_shape=jax.ShapeDtypeStruct((1,), jnp.float32),
        grid=(b_pad // tb,),
        in_specs=[
            pl.BlockSpec((1, D), lambda i: (0, 0)),   # phi: resident every step
            pl.BlockSpec((tb, D), lambda i: (i, 0)),  # y_in batch tile
            pl.BlockSpec((tb, D), lambda i: (i, 0)),  # y_target batch tile
        ],
        out_specs=pl.BlockSpec(memory_space=pltpu.MemorySpace.SMEM),
        scratch_shapes=[pltpu.SMEM((1,), jnp.float32)],
        compiler_params=pltpu.CompilerParams(
            dimension_semantics=("arbitrary",)),      # sequential accumulation axis
    )(phi2d, y_in, y_target)
    return out[0]


class LearnedLossWeightedMseJax:
    """Parameter container mirroring the PyTorch module's __init__."""

    def __init__(self, in_dim, hidden_dim, out_dim, key=None):
        self.out_dim = out_dim
        if key is None:
            key = jax.random.PRNGKey(0)
        k1, k2, k3, k4, k5, k6 = jax.random.split(key, 6)
        # Linear layers declared in __init__ but never used by forward() — kept
        # only for parameter-shape fidelity, deterministic init.
        self.fc1_w = jax.random.normal(k1, (20, 301), jnp.float32) * 0.02
        self.fc1_b = jax.random.normal(k2, (20,), jnp.float32) * 0.02
        self.fc2_w = jax.random.normal(k3, (20, 20), jnp.float32) * 0.02
        self.fc2_b = jax.random.normal(k4, (20,), jnp.float32) * 0.02
        self.out_w = jax.random.normal(k5, (301, 20), jnp.float32) * 0.02
        self.out_b = jax.random.normal(k6, (301,), jnp.float32) * 0.02
        self.reset()

    def reset(self):
        # matches torch: self.phi = nn.Parameter(torch.ones(out_dim))
        self.phi = jnp.ones((self.out_dim,), jnp.float32)

    def get_parameters(self):
        return self.phi

    def forward(self, y_in, y_target):
        return learned_loss_weighted_mse(self.phi, y_in, y_target)


def _reference(phi, y_in, y_target):
    return jnp.mean(
        jnp.sum(phi[None, :].astype(jnp.float32)
                * jnp.abs(y_in.astype(jnp.float32) - y_target.astype(jnp.float32)),
                axis=1))


if __name__ == "__main__":
    key = jax.random.PRNGKey(0)
    OUT_DIM = 301  # the module hardcodes 301-dim features

    module = LearnedLossWeightedMseJax(in_dim=OUT_DIM, hidden_dim=20, out_dim=OUT_DIM)

    # Case 1: batch that is already sublane-aligned (no padding path).
    k1, k2, k3, k4 = jax.random.split(key, 4)
    y_in_a = jax.random.normal(k1, (8, OUT_DIM), jnp.float32)
    y_tg_a = jax.random.normal(k2, (8, OUT_DIM), jnp.float32)
    loss_a = module.forward(y_in_a, y_tg_a)
    jax.block_until_ready(loss_a)
    ref_a = _reference(module.phi, y_in_a, y_tg_a)
    assert jnp.allclose(loss_a, ref_a, rtol=1e-5, atol=1e-5), (loss_a, ref_a)

    # Case 2: non-multiple-of-8 batch exercises the zero-row padding / true-B divisor.
    y_in_b = jax.random.normal(k3, (12, OUT_DIM), jnp.float32)
    y_tg_b = jax.random.normal(k4, (12, OUT_DIM), jnp.float32)
    loss_b = module.forward(y_in_b, y_tg_b)
    jax.block_until_ready(loss_b)
    ref_b = _reference(module.phi, y_in_b, y_tg_b)
    assert jnp.allclose(loss_b, ref_b, rtol=1e-5, atol=1e-5), (loss_b, ref_b)

    print("KERNEL_OK")
</pallas_src>

<mosaic_0001>
module attributes {stable_mosaic.version = 11 : i64} {
  func.func @_weighted_l1_kernel(%arg0: i32, %arg1: memref<1x301xf32, #tpu.memory_space<vmem>>, %arg2: memref<8x301xf32, #tpu.memory_space<vmem>>, %arg3: memref<8x301xf32, #tpu.memory_space<vmem>>, %arg4: memref<1xf32, #tpu.memory_space<smem>>, %arg5: memref<1xf32, #tpu.memory_space<smem>>) attributes {dimension_semantics = [#tpu.dimension_semantics<arbitrary>], iteration_bounds = array<i64: 1>, scalar_prefetch = 0 : i64, scratch_operands = 1 : i64, tpu.core_type = #tpu.core_type<tc>, window_params = [{pipeline_mode = #tpu.pipeline_mode<synchronous>, transform_indices = @transform_0, window_bounds = array<i64: 1, 301>}, {transform_indices = @transform_1, window_bounds = array<i64: 8, 301>}, {transform_indices = @transform_2, window_bounds = array<i64: 8, 301>}, {transform_indices = @transform_3, window_bounds = array<i64: 1>}]} {
    %c0_i32 = arith.constant 0 : i32
    %0 = arith.cmpi eq, %arg0, %c0_i32 : i32
    %1 = arith.extui %0 : i1 to i32
    %c0_i32_0 = arith.constant 0 : i32
    %2 = arith.cmpi ne, %1, %c0_i32_0 : i32
    scf.if %2 {
      %cst_11 = arith.constant 0.000000e+00 : f32
      %c0_12 = arith.constant 0 : index
      %22 = memref.load %arg5[%c0_12] : memref<1xf32, #tpu.memory_space<smem>>
      memref.store %cst_11, %arg5[%c0_12] : memref<1xf32, #tpu.memory_space<smem>>
    } else {
    }
    %c0 = arith.constant 0 : index
    %c0_1 = arith.constant 0 : index
    %3 = vector.load %arg2[%c0, %c0_1] : memref<8x301xf32, #tpu.memory_space<vmem>>, vector<8x301xf32>
    %c0_2 = arith.constant 0 : index
    %c0_3 = arith.constant 0 : index
    %4 = vector.load %arg3[%c0_2, %c0_3] : memref<8x301xf32, #tpu.memory_space<vmem>>, vector<8x301xf32>
    %5 = arith.subf %3, %4 : vector<8x301xf32>
    %6 = math.absf %5 : vector<8x301xf32>
    %c0_4 = arith.constant 0 : index
    %c0_5 = arith.constant 0 : index
    %7 = vector.load %arg1[%c0_4, %c0_5] : memref<1x301xf32, #tpu.memory_space<vmem>>, vector<1x301xf32>
    %8 = vector.broadcast %7 : vector<1x301xf32> to vector<8x301xf32>
    %9 = arith.mulf %6, %8 : vector<8x301xf32>
    %cst = arith.constant dense<0.000000e+00> : vector<8xf32>
    %10 = vector.multi_reduction <add>, %9, %cst [1] : vector<8x301xf32> to vector<8xf32>
    %11 = vector.shape_cast %10 : vector<8xf32> to vector<8x1xf32>
    %c0_6 = arith.constant 0 : index
    %12 = memref.load %arg5[%c0_6] : memref<1xf32, #tpu.memory_space<smem>>
    %13 = vector.shape_cast %11 : vector<8x1xf32> to vector<1x8x1xf32>
    %cst_7 = arith.constant dense<0.000000e+00> : vector<1xf32>
    %14 = vector.multi_reduction <add>, %13, %cst_7 [1, 2] : vector<1x8x1xf32> to vector<1xf32>
    %15 = vector.shape_cast %14 : vector<1xf32> to vector<1x1x1xf32>
    %16 = vector.extract %15[0, 0, 0] : f32 from vector<1x1x1xf32>
    %17 = arith.addf %12, %16 : f32
    %c0_8 = arith.constant 0 : index
    %18 = memref.load %arg5[%c0_8] : memref<1xf32, #tpu.memory_space<smem>>
    memref.store %17, %arg5[%c0_8] : memref<1xf32, #tpu.memory_space<smem>>
    %c0_i32_9 = arith.constant 0 : i32
    %19 = arith.cmpi eq, %arg0, %c0_i32_9 : i32
    %20 = arith.extui %19 : i1 to i32
    %c0_i32_10 = arith.constant 0 : i32
    %21 = arith.cmpi ne, %20, %c0_i32_10 : i32
    scf.if %21 {
      %c0_11 = arith.constant 0 : index
      %22 = memref.load %arg5[%c0_11] : memref<1xf32, #tpu.memory_space<smem>>
      %cst_12 = arith.constant 1.250000e-01 : f32
      %23 = arith.mulf %22, %cst_12 : f32
      %c0_13 = arith.constant 0 : index
      %24 = memref.load %arg4[%c0_13] : memref<1xf32, #tpu.memory_space<smem>>
      memref.store %23, %arg4[%c0_13] : memref<1xf32, #tpu.memory_space<smem>>
    } else {
    }
    return
  }
  func.func @transform_0(%arg0: i32) -> (i32, i32) {
    %c0_i32 = arith.constant 0 : i32
    %c0_i32_0 = arith.constant 0 : i32
    %c0_i32_1 = arith.constant 0 : i32
    return %c0_i32, %c0_i32_0 : i32, i32
  }
  func.func @transform_1(%arg0: i32) -> (i32, i32) {
    %c0_i32 = arith.constant 0 : i32
    %c0_i32_0 = arith.constant 0 : i32
    return %arg0, %c0_i32 : i32, i32
  }
  func.func @transform_2(%arg0: i32) -> (i32, i32) {
    %c0_i32 = arith.constant 0 : i32
    %c0_i32_0 = arith.constant 0 : i32
    return %arg0, %c0_i32 : i32, i32
  }
  func.func @transform_3(%arg0: i32) -> i32 {
    %c0_i32 = arith.constant 0 : i32
    %c0_i32_0 = arith.constant 0 : i32
    return %c0_i32 : i32
  }
}

</mosaic_0001>

<llo_original>
// kernel: tpu_custom_call.1
$region0: #{tpu_custom_call.1}
  #allocation0 [shape = 'u32[]', space=smem, size = 0x4, offset = 0x4, fixed_abs, tag = 'smem constant byte address 0x4 - core index']
  #allocation1 [shape = 'u32[144,128]{1,0:T(1,128)}', space=vmem, size = 0x12000, scoped, tag = 'internal scratch']
  #allocation2 [shape = 'f32[1]{0:T(128)}', space=smem, size = 0x200, scoped, tag = 'scratch operand']
  %s0 = inlined_call_operand.hbm [shape: f32[1,301], index: 0, kind: input, shape index: {}]
  %s1 = inlined_call_operand.hbm [shape: f32[8,301], index: 1, kind: input, shape index: {}]
  %s2 = inlined_call_operand.hbm [shape: f32[8,301], index: 2, kind: input, shape index: {}]
  %s3 = inlined_call_operand.hbm [shape: f32[1], index: 3, kind: output, shape index: {}]
  %s4 = sld [smem:[#allocation0]]
  $region42: #{tpu_custom_call.1} parent=0
    _
  %s6 = ssub.s32 1, %s4
  %s7 = scalar_select 0, %s6, %s4
  $region1: #{tpu_custom_call.1} parent=0
    #allocation3 [shape = 'u8[1536]{0}', space=vmem, size = 0x800, scoped, tag = 'input window, operand 0, single buffered']
    #allocation4 [shape = 's32[1]{0}', space=sflag, size = 0x4, scoped, tag = 'scoped memory for tpu_custom_call.1']
    #allocation5 [shape = 's32[1]{0}', space=sflag, size = 0x4, scoped, tag = 'scoped memory for tpu_custom_call.1']
    #allocation6 [shape = 'u8[12288]{0}', space=vmem, size = 0x3000, scoped, tag = 'input window, operand 1, single buffered']
    #allocation7 [shape = 's32[1]{0}', space=sflag, size = 0x4, scoped, tag = 'scoped memory for tpu_custom_call.1']
    #allocation8 [shape = 'u8[12288]{0}', space=vmem, size = 0x3000, scoped, tag = 'input window, operand 2, single buffered']
    #allocation9 [shape = 'u8[512]{0}', space=smem, size = 0x200, scoped, tag = 'output window, operand 0, single buffered']
    %8 = vsyncpa [#allocation4], 0
    %9 = vsyncpa [#allocation7], 0
    %10 = vsyncpa [#allocation5], 0
    // Predicated region
    $region2: #{tpu_custom_call.1} parent=1 // pred_check
      _
    $region3: #{tpu_custom_call.1} parent=1 // pred_check_branch
      %12 = sbr.rel (0) target = $region5
    $region4: #{tpu_custom_call.1} parent=1 // pred_region
      %s14 = ssub.s32 48, 48
      %15 = vsyncadd [#allocation4], %s14
      %s17 = sshll.u32 [#allocation3], 4
      %s18 = int_to_ptr.vmem [resolvable:$true] %s17
      %20 = dma.hbm_to_vmem [thread:$0]  %s0, 48, %s18, [#allocation4]
    $region5: #{tpu_custom_call.1} parent=1 // pred_fallthru
      _
    // Predicated region
    $region6: #{tpu_custom_call.1} parent=1 // pred_check
      _
    $region7: #{tpu_custom_call.1} parent=1 // pred_check_branch
      %22 = sbr.rel (0) target = $region9
    $region8: #{tpu_custom_call.1} parent=1 // pred_region
      %s24 = ssub.s32 384, 384
      %25 = vsyncadd [#allocation7], %s24
      %s27 = sshll.u32 [#allocation6], 4
      %s28 = int_to_ptr.vmem [resolvable:$true] %s27
      %30 = dma.hbm_to_vmem [thread:$0]  %s1, 384, %s28, [#allocation7]
    $region9: #{tpu_custom_call.1} parent=1 // pred_fallthru
      _
    // Predicated region
    $region10: #{tpu_custom_call.1} parent=1 // pred_check
      _
    $region11: #{tpu_custom_call.1} parent=1 // pred_check_branch
      %32 = sbr.rel (0) target = $region13
    $region12: #{tpu_custom_call.1} parent=1 // pred_region
      %s34 = ssub.s32 384, 384
      %35 = vsyncadd [#allocation7], %s34
      %s37 = sshll.u32 [#allocation8], 4
      %s38 = int_to_ptr.vmem [resolvable:$true] %s37
      %40 = dma.hbm_to_vmem [thread:$0]  %s2, 384, %s38, [#allocation7]
    $region13: #{tpu_custom_call.1} parent=1 // pred_fallthru
      _
    // Predicated region
    $region14: #{tpu_custom_call.1} parent=1 // pred_check
      _
    $region15: #{tpu_custom_call.1} parent=1 // pred_check_branch
      %42 = sbr.rel (0) target = $region17
    $region16: #{tpu_custom_call.1} parent=1 // pred_region
      %43 = dma.done [#allocation4], 48
    $region17: #{tpu_custom_call.1} parent=1 // pred_fallthru
      _
    // Predicated region
    $region18: #{tpu_custom_call.1} parent=1 // pred_check
      _
    $region19: #{tpu_custom_call.1} parent=1 // pred_check_branch
      %45 = sbr.rel (0) target = $region21
    $region20: #{tpu_custom_call.1} parent=1 // pred_region
      %46 = dma.done [#allocation7], 384
    $region21: #{tpu_custom_call.1} parent=1 // pred_fallthru
      _
    // Predicated region
    $region22: #{tpu_custom_call.1} parent=1 // pred_check
      _
    $region23: #{tpu_custom_call.1} parent=1 // pred_check_branch
      %48 = sbr.rel (0) target = $region25
    $region24: #{tpu_custom_call.1} parent=1 // pred_region
      %49 = dma.done [#allocation7], 384
    $region25: #{tpu_custom_call.1} parent=1 // pred_fallthru
      _
    %p50 = scmp.eq.s32.totalorder 0, 0
    // Predicated region
    $region26: #{tpu_custom_call.1} parent=1 // pred_check
      %p51 = pneg %p50
    $region27: #{tpu_custom_call.1} parent=1 // pred_check_branch
      %53 = sbr.rel (%p51) target = $region29
    $region28: #{tpu_custom_call.1} parent=1 // pred_region
      %s54 = scalar_lea.smem [#allocation2], 0
      %55 = sst [smem:[%s54]] 0.0
    $region29: #{tpu_custom_call.1} parent=1 // pred_fallthru
      _
    %v56 = vld [vmem:[#allocation6] sm:$0xff]
    %v57 = vld [vmem:[#allocation6 + $0x8] sm:$0xff]
    %v58 = vld [vmem:[#allocation6 + $0x10] sm:$0xff]
    %v59 = vld [vmem:[#allocation8] sm:$0xff]
    %v60 = vld [vmem:[#allocation8 + $0x8] sm:$0xff]
    %v61 = vld [vmem:[#allocation8 + $0x10] sm:$0xff]
    %v62 = vsub.f32 %v56, %v59
    %v63 = vsub.f32 %v57, %v60
    %v64 = vsub.f32 %v58, %v61
    %v65 = vand.u32 2147483647, %v62
    %v66 = vand.u32 2147483647, %v63
    %v67 = vand.u32 2147483647, %v64
    %v68 = vld [vmem:[#allocation3] sm:$0x7]
    %v70 = vlaneseq
    %v71 = vshrl.u32 %v70, 7
    %v72 = vsub.s32 0, %v71
    %v73 = vrot.slane %v68, %v72
    %v74 = vlaneseq
    %v75 = vshrl.u32 %v74, 7
    %v76 = vsub.s32 1, %v75
    %v77 = vrot.slane %v68, %v76
    %v78 = vlaneseq
    %v79 = vshrl.u32 %v78, 7
    %v80 = vsub.s32 2, %v79
    %v81 = vrot.slane %v68, %v80
    %v85 = vmul.f32 %v65, %v73
    %v86 = vmul.f32 %v66, %v77
    %v87 = vmul.f32 %v67, %v81
    %v88 = vadd.f32 %v85, %v86
    %vm89 = vcmask 367616
    %v90 = vsel %vm89, %v87, 0.0
    %v91 = vadd.f32 %v88, %v90
    %92 = vadd.xlane.f32.xlu0 %v91
    %v93 = vpop.xlane.xlu0 %92
    %s94 = sld [smem:[#allocation2]]
    %vm95 = vcmask 7168
    %v96 = vsel %vm95, %v93, 0.0
    %97 = vadd.xlane.f32.xlu0 %v96
    %v98 = vpop.xlane.xlu0 %97
    %v99 = vrot.slane %v98, 4
    %v100 = vadd.f32 %v98, %v99
    %v101 = vrot.slane %v100, 2
    %v102 = vadd.f32 %v100, %v101
    %v103 = vrot.slane %v102, 1
    %v104 = vadd.f32 %v102, %v103
    %s105 = vtos %v104
    %s106 = sadd.f32 %s94, %s105
    %s107 = scalar_lea.smem [#allocation2], 0
    %108 = sst [smem:[%s107]] %s106
    // Predicated region
    $region30: #{tpu_custom_call.1} parent=1 // pred_check
      %p109 = pneg %p50
    $region31: #{tpu_custom_call.1} parent=1 // pred_check_branch
      %111 = sbr.rel (%p109) target = $region33
    $region32: #{tpu_custom_call.1} parent=1 // pred_region
      %s112 = sld [smem:[#allocation2]]
      %s113 = smul.f32 %s112, 0.125
      %s114 = scalar_lea.smem [#allocation9], 0
      %115 = sst [smem:[%s114]] %s113
    $region33: #{tpu_custom_call.1} parent=1 // pred_fallthru
      _
    // Predicated region
    $region34: #{tpu_custom_call.1} parent=1 // pred_check
      _
    $region35: #{tpu_custom_call.1} parent=1 // pred_check_branch
      %117 = sbr.rel (0) target = $region37
    $region36: #{tpu_custom_call.1} parent=1 // pred_region
      %s119 = ssub.s32 16, 16
      %120 = vsyncadd [#allocation5], %s119
      %123 = dma.smem_to_hbm [#allocation9], 16, %s3, [#allocation5]
    $region37: #{tpu_custom_call.1} parent=1 // pred_fallthru
      _
    // Predicated region
    $region38: #{tpu_custom_call.1} parent=1 // pred_check
      _
    $region39: #{tpu_custom_call.1} parent=1 // pred_check_branch
      %125 = sbr.rel (0) target = $region41
    $region40: #{tpu_custom_call.1} parent=1 // pred_region
      %126 = dma.done [#allocation5], 16
    $region41: #{tpu_custom_call.1} parent=1 // pred_fallthru
      _
    %127 = sfence
    %128 = vsyncpa [#allocation4], 1
    %129 = vsyncpa [#allocation7], 1
    %130 = vsyncpa [#allocation5], 1

</llo_original>
